<compile_context>
chip_gen: v7x
topology: tpu7x:2x2x1
jax: 0.10.0
libtpu: 0.0.40
codegen_flags: <defaults>
</compile_context>

<pallas_src>
import jax
import jax.numpy as jnp
from jax.experimental import pallas as pl
from jax.experimental.pallas import tpu as pltpu

N1, N2, N3, N4 = 4, 4, 3, 3          # split sizes along dim=1
F_TOTAL = N1 + N2 + N3 + N4          # = 14 input features


def _fused_split_linear_add_kernel(x_ref, wT_ref, b_ref, y1_ref, v3_ref, v4_ref):
    """One (tb, 14) batch tile of x1 -> (y1, v3, v4) tiles.

    y1 = v1 @ W^T + b + v2 computed with 4 unrolled VPU broadcast-FMAs in f32.
    v3 / v4 are pass-through copies from the single VMEM read of x1.
    """
    x = x_ref[...]                                   # single read of the tile
    v1 = x[:, 0:N1].astype(jnp.float32)              # (tb, 4)
    v2 = x[:, N1:N1 + N2].astype(jnp.float32)        # (tb, 4)

    wT = wT_ref[...].astype(jnp.float32)             # (4, 4), already (in, out)
    y = b_ref[...].astype(jnp.float32) + v2          # bias + v2 hoisted once
    # K = N = 4: unrolled broadcast-multiply-adds; MXU intentionally unused.
    for k in range(N1):
        y = y + v1[:, k:k + 1] * wT[k:k + 1, :]
    y1_ref[...] = y.astype(y1_ref.dtype)

    # Pass-through splits (written from the same single read of x1).
    v3_ref[...] = x[:, N1 + N2:N1 + N2 + N3]
    v4_ref[...] = x[:, N1 + N2 + N3:F_TOTAL]


def model_forward(x1, weight, bias, *, block_b=4096):
    """x1: (B, 14); weight: (4, 4) torch layout (out, in); bias: (4,)."""
    B, F = x1.shape
    assert F == F_TOTAL, f"expected {F_TOTAL} features, got {F}"

    # Sublane granularity by element width (f32: 8, bf16: 16, int8/fp8: 32).
    itemsize = jnp.dtype(x1.dtype).itemsize
    sub = {4: 8, 2: 16, 1: 32}.get(itemsize, 8)

    # Batch tile: multiple of `sub`, capped by block_b; no padding of the
    # arrays themselves — the cdiv grid + Pallas edge masking handle the tail.
    tb = max(sub, min(block_b, ((B + sub - 1) // sub) * sub))
    tb = ((tb + sub - 1) // sub) * sub
    grid = (pl.cdiv(B, tb),)

    wT = weight.T                     # (in, out) — transpose once at trace time
    b2d = bias.reshape(1, N1)

    out_shapes = (
        jax.ShapeDtypeStruct((B, N1), x1.dtype),
        jax.ShapeDtypeStruct((B, N3), x1.dtype),
        jax.ShapeDtypeStruct((B, N4), x1.dtype),
    )

    y1, v3, v4 = pl.pallas_call(
        _fused_split_linear_add_kernel,
        out_shape=out_shapes,
        grid_spec=pltpu.PrefetchScalarGridSpec(
            num_scalar_prefetch=0,
            grid=grid,
            in_specs=[
                pl.BlockSpec((tb, F_TOTAL), lambda i: (i, 0)),   # x1 — read once
                pl.BlockSpec((N1, N1), lambda i: (0, 0)),        # W^T (resident)
                pl.BlockSpec((1, N1), lambda i: (0, 0)),         # bias (resident)
            ],
            out_specs=[
                pl.BlockSpec((tb, N1), lambda i: (i, 0)),        # v1@W^T + b + v2
                pl.BlockSpec((tb, N3), lambda i: (i, 0)),        # v3 pass-through
                pl.BlockSpec((tb, N4), lambda i: (i, 0)),        # v4 pass-through
            ],
        ),
        compiler_params=pltpu.CompilerParams(
            dimension_semantics=("parallel",),      # megacore sharding on v7x
            vmem_limit_bytes=32 * 1024 * 1024,      # safe on v7x, lifts v5e's 16 MiB
        ),
    )(x1, wT, b2d)
    return y1, v3, v4


def reference_forward(x1, weight, bias):
    v1 = x1[:, 0:N1]
    v2 = x1[:, N1:N1 + N2]
    v3 = x1[:, N1 + N2:N1 + N2 + N3]
    v4 = x1[:, N1 + N2 + N3:F_TOTAL]
    y = v1 @ weight.T + bias
    return y + v2, v3, v4


if __name__ == "__main__":
    key = jax.random.PRNGKey(0)
    kx, kw, kb = jax.random.split(key, 3)

    # B deliberately NOT a multiple of 8 to exercise the masked edge block.
    B = 13
    x1 = jax.random.normal(kx, (B, F_TOTAL), dtype=jnp.float32)

    # Deterministic params mimicking torch.nn.Linear(4, 4) default init
    # (uniform in [-1/sqrt(in_features), 1/sqrt(in_features)]).
    bound = 1.0 / jnp.sqrt(jnp.float32(N1))
    weight = jax.random.uniform(kw, (N1, N1), jnp.float32, -bound, bound)
    bias = jax.random.uniform(kb, (N1,), jnp.float32, -bound, bound)

    r1, r3, r4 = reference_forward(x1, weight, bias)

    # 1) Default (single-block) path.
    y1, y3, y4 = model_forward(x1, weight, bias)
    jax.block_until_ready((y1, y3, y4))
    assert jnp.allclose(y1, r1, atol=1e-5), "v1+v2 mismatch (default tile)"
    assert jnp.allclose(y3, r3), "v3 mismatch (default tile)"
    assert jnp.allclose(y4, r4), "v4 mismatch (default tile)"

    # 2) Multi-block path with a partial edge block (grid = 2, last block masked).
    z1, z3, z4 = model_forward(x1, weight, bias, block_b=8)
    jax.block_until_ready((z1, z3, z4))
    assert jnp.allclose(z1, r1, atol=1e-5), "v1+v2 mismatch (multi-block)"
    assert jnp.allclose(z3, r3), "v3 mismatch (multi-block)"
    assert jnp.allclose(z4, r4), "v4 mismatch (multi-block)"

    print("KERNEL_OK")
</pallas_src>

<mosaic_0001>
module attributes {stable_mosaic.version = 11 : i64} {
  func.func @_fused_split_linear_add_kernel(%arg0: i32, %arg1: memref<16x14xf32, #tpu.memory_space<vmem>>, %arg2: memref<4x4xf32, #tpu.memory_space<vmem>>, %arg3: memref<1x4xf32, #tpu.memory_space<vmem>>, %arg4: memref<16x4xf32, #tpu.memory_space<vmem>>, %arg5: memref<16x3xf32, #tpu.memory_space<vmem>>, %arg6: memref<16x3xf32, #tpu.memory_space<vmem>>) attributes {dimension_semantics = [#tpu.dimension_semantics<parallel>], iteration_bounds = array<i64: 1>, scalar_prefetch = 0 : i64, scratch_operands = 0 : i64, tpu.core_type = #tpu.core_type<tc>, window_params = [{transform_indices = @transform_0, window_bounds = array<i64: 16, 14>}, {pipeline_mode = #tpu.pipeline_mode<synchronous>, transform_indices = @transform_1, window_bounds = array<i64: 4, 4>}, {pipeline_mode = #tpu.pipeline_mode<synchronous>, transform_indices = @transform_2, window_bounds = array<i64: 1, 4>}, {transform_indices = @transform_3, window_bounds = array<i64: 16, 4>}, {transform_indices = @transform_4, window_bounds = array<i64: 16, 3>}, {transform_indices = @transform_5, window_bounds = array<i64: 16, 3>}]} {
    %c0 = arith.constant 0 : index
    %c0_0 = arith.constant 0 : index
    %0 = vector.load %arg1[%c0, %c0_0] : memref<16x14xf32, #tpu.memory_space<vmem>>, vector<16x14xf32>
    %1 = vector.extract_strided_slice %0 {offsets = [0, 0], sizes = [16, 4], strides = [1, 1]} : vector<16x14xf32> to vector<16x4xf32>
    %2 = vector.extract_strided_slice %0 {offsets = [0, 4], sizes = [16, 4], strides = [1, 1]} : vector<16x14xf32> to vector<16x4xf32>
    %c0_1 = arith.constant 0 : index
    %c0_2 = arith.constant 0 : index
    %3 = vector.load %arg2[%c0_1, %c0_2] : memref<4x4xf32, #tpu.memory_space<vmem>>, vector<4x4xf32>
    %c0_3 = arith.constant 0 : index
    %c0_4 = arith.constant 0 : index
    %4 = vector.load %arg3[%c0_3, %c0_4] : memref<1x4xf32, #tpu.memory_space<vmem>>, vector<1x4xf32>
    %5 = vector.broadcast %4 : vector<1x4xf32> to vector<16x4xf32>
    %6 = arith.addf %5, %2 : vector<16x4xf32>
    %7 = vector.extract_strided_slice %1 {offsets = [0, 0], sizes = [16, 1], strides = [1, 1]} : vector<16x4xf32> to vector<16x1xf32>
    %8 = vector.extract_strided_slice %3 {offsets = [0, 0], sizes = [1, 4], strides = [1, 1]} : vector<4x4xf32> to vector<1x4xf32>
    %9 = vector.broadcast %7 : vector<16x1xf32> to vector<16x4xf32>
    %10 = vector.broadcast %8 : vector<1x4xf32> to vector<16x4xf32>
    %11 = arith.mulf %9, %10 : vector<16x4xf32>
    %12 = arith.addf %6, %11 : vector<16x4xf32>
    %13 = vector.extract_strided_slice %1 {offsets = [0, 1], sizes = [16, 1], strides = [1, 1]} : vector<16x4xf32> to vector<16x1xf32>
    %14 = vector.extract_strided_slice %3 {offsets = [1, 0], sizes = [1, 4], strides = [1, 1]} : vector<4x4xf32> to vector<1x4xf32>
    %15 = vector.broadcast %13 : vector<16x1xf32> to vector<16x4xf32>
    %16 = vector.broadcast %14 : vector<1x4xf32> to vector<16x4xf32>
    %17 = arith.mulf %15, %16 : vector<16x4xf32>
    %18 = arith.addf %12, %17 : vector<16x4xf32>
    %19 = vector.extract_strided_slice %1 {offsets = [0, 2], sizes = [16, 1], strides = [1, 1]} : vector<16x4xf32> to vector<16x1xf32>
    %20 = vector.extract_strided_slice %3 {offsets = [2, 0], sizes = [1, 4], strides = [1, 1]} : vector<4x4xf32> to vector<1x4xf32>
    %21 = vector.broadcast %19 : vector<16x1xf32> to vector<16x4xf32>
    %22 = vector.broadcast %20 : vector<1x4xf32> to vector<16x4xf32>
    %23 = arith.mulf %21, %22 : vector<16x4xf32>
    %24 = arith.addf %18, %23 : vector<16x4xf32>
    %25 = vector.extract_strided_slice %1 {offsets = [0, 3], sizes = [16, 1], strides = [1, 1]} : vector<16x4xf32> to vector<16x1xf32>
    %26 = vector.extract_strided_slice %3 {offsets = [3, 0], sizes = [1, 4], strides = [1, 1]} : vector<4x4xf32> to vector<1x4xf32>
    %27 = vector.broadcast %25 : vector<16x1xf32> to vector<16x4xf32>
    %28 = vector.broadcast %26 : vector<1x4xf32> to vector<16x4xf32>
    %29 = arith.mulf %27, %28 : vector<16x4xf32>
    %30 = arith.addf %24, %29 : vector<16x4xf32>
    %c0_5 = arith.constant 0 : index
    %c0_6 = arith.constant 0 : index
    %31 = vector.load %arg4[%c0_5, %c0_6] : memref<16x4xf32, #tpu.memory_space<vmem>>, vector<16x4xf32>
    tpu.vector_store %arg4[%c0_5, %c0_6], %30 {strides = array<i32>} : memref<16x4xf32, #tpu.memory_space<vmem>>, vector<16x4xf32>,
    %32 = vector.extract_strided_slice %0 {offsets = [0, 8], sizes = [16, 3], strides = [1, 1]} : vector<16x14xf32> to vector<16x3xf32>
    %c0_7 = arith.constant 0 : index
    %c0_8 = arith.constant 0 : index
    %33 = vector.load %arg5[%c0_7, %c0_8] : memref<16x3xf32, #tpu.memory_space<vmem>>, vector<16x3xf32>
    tpu.vector_store %arg5[%c0_7, %c0_8], %32 {strides = array<i32>} : memref<16x3xf32, #tpu.memory_space<vmem>>, vector<16x3xf32>,
    %34 = vector.extract_strided_slice %0 {offsets = [0, 11], sizes = [16, 3], strides = [1, 1]} : vector<16x14xf32> to vector<16x3xf32>
    %c0_9 = arith.constant 0 : index
    %c0_10 = arith.constant 0 : index
    %35 = vector.load %arg6[%c0_9, %c0_10] : memref<16x3xf32, #tpu.memory_space<vmem>>, vector<16x3xf32>
    tpu.vector_store %arg6[%c0_9, %c0_10], %34 {strides = array<i32>} : memref<16x3xf32, #tpu.memory_space<vmem>>, vector<16x3xf32>,
    return
  }
  func.func @transform_0(%arg0: i32) -> (i32, i32) {
    %c0_i32 = arith.constant 0 : i32
    %c0_i32_0 = arith.constant 0 : i32
    return %arg0, %c0_i32 : i32, i32
  }
  func.func @transform_1(%arg0: i32) -> (i32, i32) {
    %c0_i32 = arith.constant 0 : i32
    %c0_i32_0 = arith.constant 0 : i32
    %c0_i32_1 = arith.constant 0 : i32
    return %c0_i32, %c0_i32_0 : i32, i32
  }
  func.func @transform_2(%arg0: i32) -> (i32, i32) {
    %c0_i32 = arith.constant 0 : i32
    %c0_i32_0 = arith.constant 0 : i32
    %c0_i32_1 = arith.constant 0 : i32
    return %c0_i32, %c0_i32_0 : i32, i32
  }
  func.func @transform_3(%arg0: i32) -> (i32, i32) {
    %c0_i32 = arith.constant 0 : i32
    %c0_i32_0 = arith.constant 0 : i32
    return %arg0, %c0_i32 : i32, i32
  }
  func.func @transform_4(%arg0: i32) -> (i32, i32) {
    %c0_i32 = arith.constant 0 : i32
    %c0_i32_0 = arith.constant 0 : i32
    return %arg0, %c0_i32 : i32, i32
  }
  func.func @transform_5(%arg0: i32) -> (i32, i32) {
    %c0_i32 = arith.constant 0 : i32
    %c0_i32_0 = arith.constant 0 : i32
    return %arg0, %c0_i32 : i32, i32
  }
}

</mosaic_0001>

<llo_original>
// kernel: tpu_custom_call.1
$region0: #{tpu_custom_call.1}
  #allocation0 [shape = 'u32[]', space=smem, size = 0x4, offset = 0x4, fixed_abs, tag = 'smem constant byte address 0x4 - core index']
  #allocation1 [shape = 'u32[144,128]{1,0:T(1,128)}', space=vmem, size = 0x12000, scoped, tag = 'internal scratch']
  %s0 = inlined_call_operand.hbm [shape: f32[13,14], index: 0, kind: input, shape index: {}]
  %s1 = inlined_call_operand.hbm [shape: f32[4,4], index: 1, kind: input, shape index: {}]
  %s2 = inlined_call_operand.vmem [shape: f32[1,4], index: 2, kind: input, shape index: {}]
  %s3 = inlined_call_operand.vmem [shape: f32[13,4], index: 3, kind: output, shape index: {0}]
  %s4 = inlined_call_operand.vmem [shape: f32[13,3], index: 4, kind: output, shape index: {1}]
  %s5 = inlined_call_operand.vmem [shape: f32[13,3], index: 5, kind: output, shape index: {2}]
  %6 = xla_tuple %s3, %s4, %s5
  %s7 = sld [smem:[#allocation0]]
  $region46: #{tpu_custom_call.1} parent=0
    _
  %s9 = ssub.s32 1, %s7
  %s10 = scalar_select 0, %s9, %s7
  $region1: #{tpu_custom_call.1} parent=0
    #allocation2 [shape = 'u8[8192]{0}', space=vmem, size = 0x2000, scoped, tag = 'input window, operand 0, single buffered']
    #allocation3 [shape = 's32[1]{0}', space=sflag, size = 0x4, scoped, tag = 'scoped memory for tpu_custom_call.1']
    #allocation4 [shape = 'u8[2048]{0}', space=vmem, size = 0x800, scoped, tag = 'input window, operand 1, single buffered']
    #allocation5 [shape = 's32[1]{0}', space=sflag, size = 0x4, scoped, tag = 'scoped memory for tpu_custom_call.1']
    %11 = vsyncpa [#allocation3], 0
    %12 = vsyncpa [#allocation5], 0
    // Predicated region
    $region2: #{tpu_custom_call.1} parent=1 // pred_check
      _
    $region3: #{tpu_custom_call.1} parent=1 // pred_check_branch
      %14 = sbr.rel (0) target = $region5
    $region4: #{tpu_custom_call.1} parent=1 // pred_region
      %s16 = ssub.s32 256, 256
      %17 = vsyncadd [#allocation3], %s16
      %s18 = sshll.u32 [#allocation2], 4
      %s19 = int_to_ptr.vmem [resolvable:$true] %s18
      %24 = dma.hbm_to_vmem [thread:$0]  %s0, 256, %s19, [#allocation3], 128, 128, 8
    $region5: #{tpu_custom_call.1} parent=1 // pred_fallthru
      _
    // Predicated region
    $region6: #{tpu_custom_call.1} parent=1 // pred_check
      _
    $region7: #{tpu_custom_call.1} parent=1 // pred_check_branch
      %26 = sbr.rel (0) target = $region9
    $region8: #{tpu_custom_call.1} parent=1 // pred_region
      %s28 = ssub.s32 64, 64
      %29 = vsyncadd [#allocation5], %s28
      %s31 = sshll.u32 [#allocation4], 4
      %s32 = int_to_ptr.vmem [resolvable:$true] %s31
      %34 = dma.hbm_to_vmem [thread:$0]  %s1, 64, %s32, [#allocation5]
    $region9: #{tpu_custom_call.1} parent=1 // pred_fallthru
      _
    // Predicated region
    $region10: #{tpu_custom_call.1} parent=1 // pred_check
      _
    $region11: #{tpu_custom_call.1} parent=1 // pred_check_branch
      %36 = sbr.rel (0) target = $region13
    $region12: #{tpu_custom_call.1} parent=1 // pred_region
      _
    $region13: #{tpu_custom_call.1} parent=1 // pred_fallthru
      _
    // Predicated region
    $region14: #{tpu_custom_call.1} parent=1 // pred_check
      _
    $region15: #{tpu_custom_call.1} parent=1 // pred_check_branch
      %38 = sbr.rel (0) target = $region17
    $region16: #{tpu_custom_call.1} parent=1 // pred_region
      %39 = dma.done [#allocation3], 256
    $region17: #{tpu_custom_call.1} parent=1 // pred_fallthru
      _
    // Predicated region
    $region18: #{tpu_custom_call.1} parent=1 // pred_check
      _
    $region19: #{tpu_custom_call.1} parent=1 // pred_check_branch
      %41 = sbr.rel (0) target = $region21
    $region20: #{tpu_custom_call.1} parent=1 // pred_region
      %42 = dma.done [#allocation5], 64
    $region21: #{tpu_custom_call.1} parent=1 // pred_fallthru
      _
    %v43 = vld [vmem:[#allocation2] sm:$0xff]
    %v44 = vld [vmem:[#allocation2 + $0x8] sm:$0xff]
    %v45 = vld [vmem:[#allocation4] sm:$0xf]
    %v46 = vld [vmem:[%s2] sm:$0x1]
    %v48 = vlaneseq
    %v49 = vshrl.u32 %v48, 7
    %v50 = vsub.s32 0, %v49
    %v51 = vrot.slane %v46, %v50
    %55 = vrot.lane.b32.xlu0 %v43, 124
    %v56 = vpop.permute.xlu0 %55
    %57 = vrot.lane.b32.xlu0 %v44, 124
    %v58 = vpop.permute.xlu0 %57
    %v61 = vadd.f32 %v51, %v56
    %v62 = vadd.f32 %v51, %v58
    %63 = vset.pattern.permute.xlu0 0
    %64 = vperm.xlu0 %63, %v43
    %v65 = vpop.permute.xlu0 %64
    %67 = vset.pattern.permute.xlu0 0
    %68 = vperm.xlu0 %67, %v44
    %v69 = vpop.permute.xlu0 %68
    %v71 = vlaneseq
    %v72 = vshrl.u32 %v71, 7
    %v73 = vsub.s32 0, %v72
    %v74 = vrot.slane %v45, %v73
    %v75 = vmul.f32 %v65, %v74
    %v76 = vmul.f32 %v69, %v74
    %v77 = vadd.f32 %v61, %v75
    %v78 = vadd.f32 %v62, %v76
    %79 = vset.pattern.permute.xlu0 1
    %80 = vperm.xlu0 %79, %v43
    %v81 = vpop.permute.xlu0 %80
    %83 = vset.pattern.permute.xlu0 1
    %84 = vperm.xlu0 %83, %v44
    %v85 = vpop.permute.xlu0 %84
    %v87 = vlaneseq
    %v88 = vshrl.u32 %v87, 7
    %v89 = vsub.s32 1, %v88
    %v90 = vrot.slane %v45, %v89
    %v91 = vmul.f32 %v81, %v90
    %v92 = vmul.f32 %v85, %v90
    %v93 = vadd.f32 %v77, %v91
    %v94 = vadd.f32 %v78, %v92
    %95 = vset.pattern.permute.xlu0 2
    %96 = vperm.xlu0 %95, %v43
    %v97 = vpop.permute.xlu0 %96
    %99 = vset.pattern.permute.xlu0 2
    %100 = vperm.xlu0 %99, %v44
    %v101 = vpop.permute.xlu0 %100
    %v103 = vlaneseq
    %v104 = vshrl.u32 %v103, 7
    %v105 = vsub.s32 2, %v104
    %v106 = vrot.slane %v45, %v105
    %v107 = vmul.f32 %v97, %v106
    %v108 = vmul.f32 %v101, %v106
    %v109 = vadd.f32 %v93, %v107
    %v110 = vadd.f32 %v94, %v108
    %111 = vset.pattern.permute.xlu0 3
    %112 = vperm.xlu0 %111, %v43
    %v113 = vpop.permute.xlu0 %112
    %115 = vset.pattern.permute.xlu0 3
    %116 = vperm.xlu0 %115, %v44
    %v117 = vpop.permute.xlu0 %116
    %v119 = vlaneseq
    %v120 = vshrl.u32 %v119, 7
    %v121 = vsub.s32 3, %v120
    %v122 = vrot.slane %v45, %v121
    %v123 = vmul.f32 %v113, %v122
    %v124 = vmul.f32 %v117, %v122
    %v125 = vadd.f32 %v109, %v123
    %v126 = vadd.f32 %v110, %v124
    %vm127 = vcmask 31744
    %128 = vst.msk [vmem:[%s3] sm:$0xff] %vm127, %v125
    %129 = vst.msk [vmem:[%s3 + $0x8] sm:$0xff] %vm127, %v126
    %130 = vrot.lane.b32.xlu0 %v43, 120
    %v131 = vpop.permute.xlu0 %130
    %132 = vrot.lane.b32.xlu0 %v44, 120
    %v133 = vpop.permute.xlu0 %132
    %vm136 = vcmask 23552
    %137 = vst.msk [vmem:[%s4] sm:$0xff] %vm136, %v131
    %138 = vst.msk [vmem:[%s4 + $0x8] sm:$0xff] %vm136, %v133
    %139 = vrot.lane.b32.xlu0 %v43, 117
    %v140 = vpop.permute.xlu0 %139
    %141 = vrot.lane.b32.xlu0 %v44, 117
    %v142 = vpop.permute.xlu0 %141
    %145 = vst.msk [vmem:[%s5] sm:$0xff] %vm136, %v140
    %146 = vst.msk [vmem:[%s5 + $0x8] sm:$0xff] %vm136, %v142
    // Predicated region
    $region22: #{tpu_custom_call.1} parent=1 // pred_check
      _
    $region23: #{tpu_custom_call.1} parent=1 // pred_check_branch
      %148 = sbr.rel (0) target = $region25
    $region24: #{tpu_custom_call.1} parent=1 // pred_region
      _
    $region25: #{tpu_custom_call.1} parent=1 // pred_fallthru
      _
    // Predicated region
    $region26: #{tpu_custom_call.1} parent=1 // pred_check
      _
    $region27: #{tpu_custom_call.1} parent=1 // pred_check_branch
      %150 = sbr.rel (0) target = $region29
    $region28: #{tpu_custom_call.1} parent=1 // pred_region
      _
    $region29: #{tpu_custom_call.1} parent=1 // pred_fallthru
      _
    // Predicated region
    $region30: #{tpu_custom_call.1} parent=1 // pred_check
      _
    $region31: #{tpu_custom_call.1} parent=1 // pred_check_branch
      %152 = sbr.rel (0) target = $region33
    $region32: #{tpu_custom_call.1} parent=1 // pred_region
      _
    $region33: #{tpu_custom_call.1} parent=1 // pred_fallthru
      _
    // Predicated region
    $region34: #{tpu_custom_call.1} parent=1 // pred_check
      _
    $region35: #{tpu_custom_call.1} parent=1 // pred_check_branch
      %154 = sbr.rel (0) target = $region37
    $region36: #{tpu_custom_call.1} parent=1 // pred_region
      _
    $region37: #{tpu_custom_call.1} parent=1 // pred_fallthru
      _
    // Predicated region
    $region38: #{tpu_custom_call.1} parent=1 // pred_check
      _
    $region39: #{tpu_custom_call.1} parent=1 // pred_check_branch
      %156 = sbr.rel (0) target = $region41
    $region40: #{tpu_custom_call.1} parent=1 // pred_region
      _
    $region41: #{tpu_custom_call.1} parent=1 // pred_fallthru
      _
    // Predicated region
    $region42: #{tpu_custom_call.1} parent=1 // pred_check
      _
    $region43: #{tpu_custom_call.1} parent=1 // pred_check_branch
      %158 = sbr.rel (0) target = $region45
    $region44: #{tpu_custom_call.1} parent=1 // pred_region
      _
    $region45: #{tpu_custom_call.1} parent=1 // pred_fallthru
      _
    %159 = vsyncpa [#allocation3], 1
    %160 = vsyncpa [#allocation5], 1

</llo_original>
